<compile_context>
chip_gen: v5e
topology: v5e:2x2
jax: 0.10.0
libtpu: 0.0.40
codegen_flags: <defaults>
</compile_context>

<pallas_src>
import jax
import jax.numpy as jnp
import numpy as np
from jax.experimental import pallas as pl
from jax.experimental.pallas import tpu as pltpu


def _round_up(v, m):
    return ((v + m - 1) // m) * m


def _point_weighted_kernel(feat_ref, w_ref, starts_ref, ends_ref, o_ref):
    """One grid step = one block of segments.

    feat_ref   : VMEM f32  [C, Np]   channels-first; rows 0..C-2 = features,
                                     row C-1 = ones (for the denominator matmul)
    w_ref      : VMEM f32  [Np, 1]   per-point weight logits
    starts_ref : VMEM i32  [1, BS]   CSR segment starts for this block
    ends_ref   : VMEM i32  [1, BS]   CSR segment ends for this block
    o_ref      : VMEM f32  [C-1, BS] per-segment weighted feature sums
    """
    feat = feat_ref[...]                 # (C, Np)
    w = w_ref[...]                       # (Np, 1)
    starts = starts_ref[...]             # (1, BS)
    ends = ends_ref[...]                 # (1, BS)

    c, npts = feat.shape
    bs = starts.shape[1]

    # Membership: point n belongs to segment s  iff  starts[s] <= n < ends[s].
    pid = jax.lax.broadcasted_iota(jnp.int32, (npts, bs), 0)
    mask = (pid >= starts) & (pid < ends)              # (Np, BS)

    neg_inf = jnp.float32(-jnp.inf)
    wm = jnp.where(mask, w, neg_inf)                   # masked logits
    m = jnp.max(wm, axis=0, keepdims=True)             # (1, BS) per-segment max
    m = jnp.where(m == neg_inf, jnp.float32(0.0), m)   # empty-segment guard
    # exp argument is <= 0 inside a segment and -inf outside -> p is exactly 0
    # for non-member points; no inf/nan intermediates reach the matmul.
    p = jnp.exp(wm - m)                                # (Np, BS)

    # Single MXU matmul: rows 0..C-2 -> weighted feature sums (unnormalized),
    # ones-row (row C-1)             -> softmax denominator per segment.
    u = jnp.dot(feat, p, preferred_element_type=jnp.float32)   # (C, BS)

    denom = u[c - 1:c, :]                              # (1, BS)
    denom = jnp.where(denom == 0.0, jnp.float32(1.0), denom)   # empty segments -> 0 out
    inv = pl.reciprocal(denom, approx=True)            # EUP slot
    inv = inv * (2.0 - denom * inv)                    # one Newton step -> ~f32 exact

    # Lane-dense full-tile store: segments on the 128-lane axis.
    o_ref[...] = (u[: c - 1, :] * inv).astype(o_ref.dtype)


def point_weighted(x, point_key, *, block_s=128):
    """x: f32[N, C] (C-1 features + 1 logit); point_key: i32[S+1] CSR offsets.

    Returns f32[S, C-1], matching PointWeighted.forward.
    """
    n, c = x.shape
    s = point_key.shape[0] - 1
    assert block_s % 128 == 0

    n_pad = max(_round_up(n, 128), 128)
    s_pad = max(_round_up(s, block_s), block_s)

    # Channels-first features with a trailing ones-row (denominator trick).
    feat = jnp.concatenate(
        [x[:, : c - 1].T, jnp.ones((1, n), dtype=x.dtype)], axis=0)       # (C, N)
    feat = jnp.pad(feat, ((0, 0), (0, n_pad - n)))                        # (C, Np)

    w_col = jnp.pad(x[:, c - 1:], ((0, n_pad - n), (0, 0)))               # (Np, 1)

    pk = point_key.astype(jnp.int32)
    pad_s = s_pad - s
    # Padded segments get start == end == N  ->  empty  ->  zero output column.
    starts = jnp.pad(pk[:-1], (0, pad_s), constant_values=n).reshape(1, s_pad)
    ends = jnp.pad(pk[1:], (0, pad_s), constant_values=n).reshape(1, s_pad)

    out_padded = pl.pallas_call(
        _point_weighted_kernel,
        out_shape=jax.ShapeDtypeStruct((c - 1, s_pad), x.dtype),
        grid_spec=pltpu.PrefetchScalarGridSpec(
            num_scalar_prefetch=0,
            grid=(s_pad // block_s,),
            in_specs=[
                # feat / logits: same block every step -> DMA'd once, stays in VMEM.
                pl.BlockSpec((c, n_pad), lambda i: (0, 0)),
                pl.BlockSpec((n_pad, 1), lambda i: (0, 0)),
                # CSR offsets for this segment block (lane-dense rows).
                pl.BlockSpec((1, block_s), lambda i: (0, i)),
                pl.BlockSpec((1, block_s), lambda i: (0, i)),
            ],
            out_specs=pl.BlockSpec((c - 1, block_s), lambda i: (0, i)),
        ),
        compiler_params=pltpu.CompilerParams(
            # Segment blocks are independent -> shard across TCs (v7x megacore).
            dimension_semantics=("parallel",),
        ),
    )(feat, w_col, starts, ends)

    # Back to the PyTorch layout [S, C-1] (wrapper-side layout plumbing).
    return out_padded[:, :s].T


def _reference(x, point_key):
    x = np.asarray(x)
    pk = np.asarray(point_key)
    s = pk.shape[0] - 1
    out = np.zeros((s, x.shape[1] - 1), dtype=x.dtype)
    for i in range(s):
        lo, hi = int(pk[i]), int(pk[i + 1])
        if hi <= lo:
            continue
        w = x[lo:hi, -1]
        w = w - w.max()
        e = np.exp(w)
        sm = e / e.sum()
        out[i] = (sm[:, None] * x[lo:hi, :-1]).sum(axis=0)
    return out


if __name__ == "__main__":
    key = jax.random.PRNGKey(0)
    N, C = 16, 5          # 4 feature channels + 1 weight-logit channel
    x = jax.random.normal(key, (N, C), dtype=jnp.float32)
    # 4 uneven segments covering all N points (CSR offsets).
    point_key = jnp.array([0, 3, 8, 12, 16], dtype=jnp.int32)

    out = point_weighted(x, point_key)
    out = jax.block_until_ready(out)

    ref = _reference(x, point_key)
    np.testing.assert_allclose(np.asarray(out), ref, rtol=1e-4, atol=1e-5)
    print("KERNEL_OK")
</pallas_src>

<mosaic_0001>
module attributes {stable_mosaic.version = 11 : i64} {
  func.func @_point_weighted_kernel(%arg0: i32, %arg1: memref<5x128xf32, #tpu.memory_space<vmem>>, %arg2: memref<128x1xf32, #tpu.memory_space<vmem>>, %arg3: memref<1x128xi32, #tpu.memory_space<vmem>>, %arg4: memref<1x128xi32, #tpu.memory_space<vmem>>, %arg5: memref<4x128xf32, #tpu.memory_space<vmem>>) attributes {dimension_semantics = [#tpu.dimension_semantics<parallel>], iteration_bounds = array<i64: 1>, scalar_prefetch = 0 : i64, scratch_operands = 0 : i64, tpu.core_type = #tpu.core_type<tc>, window_params = [{pipeline_mode = #tpu.pipeline_mode<synchronous>, transform_indices = @transform_0, window_bounds = array<i64: 5, 128>}, {pipeline_mode = #tpu.pipeline_mode<synchronous>, transform_indices = @transform_1, window_bounds = array<i64: 128, 1>}, {transform_indices = @transform_2, window_bounds = array<i64: 1, 128>}, {transform_indices = @transform_3, window_bounds = array<i64: 1, 128>}, {transform_indices = @transform_4, window_bounds = array<i64: 4, 128>}]} {
    %c0 = arith.constant 0 : index
    %c0_0 = arith.constant 0 : index
    %0 = vector.load %arg1[%c0, %c0_0] : memref<5x128xf32, #tpu.memory_space<vmem>>, vector<5x128xf32>
    %c0_1 = arith.constant 0 : index
    %c0_2 = arith.constant 0 : index
    %1 = vector.load %arg2[%c0_1, %c0_2] : memref<128x1xf32, #tpu.memory_space<vmem>>, vector<128x1xf32>
    %c0_3 = arith.constant 0 : index
    %c0_4 = arith.constant 0 : index
    %2 = vector.load %arg3[%c0_3, %c0_4] : memref<1x128xi32, #tpu.memory_space<vmem>>, vector<1x128xi32>
    %c0_5 = arith.constant 0 : index
    %c0_6 = arith.constant 0 : index
    %3 = vector.load %arg4[%c0_5, %c0_6] : memref<1x128xi32, #tpu.memory_space<vmem>>, vector<1x128xi32>
    %4 = tpu.iota {dimensions = array<i32: 0>} : vector<128x128xi32>
    %5 = vector.broadcast %2 : vector<1x128xi32> to vector<128x128xi32>
    %6 = arith.cmpi sge, %4, %5 : vector<128x128xi32>
    %7 = vector.broadcast %3 : vector<1x128xi32> to vector<128x128xi32>
    %8 = arith.cmpi slt, %4, %7 : vector<128x128xi32>
    %9 = arith.andi %6, %8 : vector<128x128xi1>
    %cst = arith.constant 0xFF800000 : f32
    %10 = vector.shape_cast %1 : vector<128x1xf32> to vector<128x1xf32>
    %11 = vector.broadcast %10 : vector<128x1xf32> to vector<128x128xf32>
    %12 = vector.broadcast %cst : f32 to vector<128x128xf32>
    %13 = arith.select %9, %11, %12 : vector<128x128xi1>, vector<128x128xf32>
    %cst_7 = arith.constant dense<0xFF800000> : vector<128xf32>
    %14 = vector.multi_reduction <maximumf>, %13, %cst_7 [0] : vector<128x128xf32> to vector<128xf32>
    %15 = vector.shape_cast %14 : vector<128xf32> to vector<1x128xf32>
    %cst_8 = arith.constant 0xFF800000 : f32
    %16 = vector.broadcast %cst_8 : f32 to vector<1x128xf32>
    %17 = arith.cmpf oeq, %15, %16 : vector<1x128xf32>
    %cst_9 = arith.constant 0.000000e+00 : f32
    %18 = vector.broadcast %cst_9 : f32 to vector<1x128xf32>
    %19 = arith.select %17, %18, %15 : vector<1x128xi1>, vector<1x128xf32>
    %20 = vector.broadcast %19 : vector<1x128xf32> to vector<128x128xf32>
    %21 = arith.subf %13, %20 : vector<128x128xf32>
    %22 = math.exp %21 : vector<128x128xf32>
    %cst_10 = arith.constant dense<0.000000e+00> : vector<5x128xf32>
    %23 = tpu.matmul %0, %22, %cst_10 {dimension_numbers = #tpu.dot_dimension_numbers<[1], [0], [0], [1], [0, 0, 1, 1], [], []>} : vector<5x128xf32>, vector<128x128xf32>, vector<5x128xf32> -> vector<5x128xf32>
    %24 = vector.extract_strided_slice %23 {offsets = [4, 0], sizes = [1, 128], strides = [1, 1]} : vector<5x128xf32> to vector<1x128xf32>
    %cst_11 = arith.constant 0.000000e+00 : f32
    %25 = vector.broadcast %cst_11 : f32 to vector<1x128xf32>
    %26 = arith.cmpf oeq, %24, %25 : vector<1x128xf32>
    %cst_12 = arith.constant 1.000000e+00 : f32
    %27 = vector.broadcast %cst_12 : f32 to vector<1x128xf32>
    %28 = arith.select %26, %27, %24 : vector<1x128xi1>, vector<1x128xf32>
    %29 = tpu.reciprocal %28 {approx = true} : vector<1x128xf32> -> vector<1x128xf32>
    %30 = arith.mulf %28, %29 : vector<1x128xf32>
    %cst_13 = arith.constant 2.000000e+00 : f32
    %31 = vector.broadcast %cst_13 : f32 to vector<1x128xf32>
    %32 = arith.subf %31, %30 : vector<1x128xf32>
    %33 = arith.mulf %29, %32 : vector<1x128xf32>
    %34 = vector.extract_strided_slice %23 {offsets = [0, 0], sizes = [4, 128], strides = [1, 1]} : vector<5x128xf32> to vector<4x128xf32>
    %35 = vector.broadcast %33 : vector<1x128xf32> to vector<4x128xf32>
    %36 = arith.mulf %34, %35 : vector<4x128xf32>
    %c0_14 = arith.constant 0 : index
    %c0_15 = arith.constant 0 : index
    %37 = vector.load %arg5[%c0_14, %c0_15] : memref<4x128xf32, #tpu.memory_space<vmem>>, vector<4x128xf32>
    tpu.vector_store %arg5[%c0_14, %c0_15], %36 {strides = array<i32>} : memref<4x128xf32, #tpu.memory_space<vmem>>, vector<4x128xf32>,
    return
  }
  func.func @transform_0(%arg0: i32) -> (i32, i32) {
    %c0_i32 = arith.constant 0 : i32
    %c0_i32_0 = arith.constant 0 : i32
    %c0_i32_1 = arith.constant 0 : i32
    return %c0_i32, %c0_i32_0 : i32, i32
  }
  func.func @transform_1(%arg0: i32) -> (i32, i32) {
    %c0_i32 = arith.constant 0 : i32
    %c0_i32_0 = arith.constant 0 : i32
    %c0_i32_1 = arith.constant 0 : i32
    return %c0_i32, %c0_i32_0 : i32, i32
  }
  func.func @transform_2(%arg0: i32) -> (i32, i32) {
    %c0_i32 = arith.constant 0 : i32
    %c0_i32_0 = arith.constant 0 : i32
    return %c0_i32, %arg0 : i32, i32
  }
  func.func @transform_3(%arg0: i32) -> (i32, i32) {
    %c0_i32 = arith.constant 0 : i32
    %c0_i32_0 = arith.constant 0 : i32
    return %c0_i32, %arg0 : i32, i32
  }
  func.func @transform_4(%arg0: i32) -> (i32, i32) {
    %c0_i32 = arith.constant 0 : i32
    %c0_i32_0 = arith.constant 0 : i32
    return %c0_i32, %arg0 : i32, i32
  }
}

</mosaic_0001>

<llo_original>
// kernel: tpu_custom_call.1
$region0: #{tpu_custom_call.1}
  #allocation0 [shape = 'u32[]', space=smem, size = 0x4, offset = 0x4, fixed_abs, tag = 'smem constant byte address 0x4 - core index']
  #allocation1 [shape = 'u32[72,128]{1,0:T(1,128)}', space=vmem, size = 0x9000, scoped, tag = 'internal scratch']
  %s0 = inlined_call_operand.vmem [shape: f32[5,128], index: 0, kind: input, shape index: {}]
  %s1 = inlined_call_operand.vmem [shape: f32[128,1], index: 1, kind: input, shape index: {}]
  %s2 = inlined_call_operand.vmem [shape: s32[1,128], index: 2, kind: input, shape index: {}]
  %s3 = inlined_call_operand.vmem [shape: s32[1,128], index: 3, kind: input, shape index: {}]
  %s4 = inlined_call_operand.hbm [shape: f32[4,128], index: 4, kind: output, shape index: {}]
  %s5 = sld [smem:[#allocation0]]
  $region26: #{tpu_custom_call.1} parent=0
    _
  %s7 = ssub.s32 1, %s5
  %s8 = scalar_select 0, %s7, %s5
  $region1: #{tpu_custom_call.1} parent=0
    #allocation2 [shape = 'u8[2048]{0}', space=vmem, size = 0x800, scoped, tag = 'output window, operand 0, single buffered']
    #allocation3 [shape = 's32[1]{0}', space=sflag, size = 0x4, scoped, tag = 'scoped memory for tpu_custom_call.1']
    %9 = vsyncpa [#allocation3], 0
    // Predicated region
    $region2: #{tpu_custom_call.1} parent=1 // pred_check
      _
    $region3: #{tpu_custom_call.1} parent=1 // pred_check_branch
      %11 = sbr.rel (0) target = $region5
    $region4: #{tpu_custom_call.1} parent=1 // pred_region
      _
    $region5: #{tpu_custom_call.1} parent=1 // pred_fallthru
      _
    // Predicated region
    $region6: #{tpu_custom_call.1} parent=1 // pred_check
      _
    $region7: #{tpu_custom_call.1} parent=1 // pred_check_branch
      %13 = sbr.rel (0) target = $region9
    $region8: #{tpu_custom_call.1} parent=1 // pred_region
      _
    $region9: #{tpu_custom_call.1} parent=1 // pred_fallthru
      _
    // Predicated region
    $region10: #{tpu_custom_call.1} parent=1 // pred_check
      _
    $region11: #{tpu_custom_call.1} parent=1 // pred_check_branch
      %15 = sbr.rel (0) target = $region13
    $region12: #{tpu_custom_call.1} parent=1 // pred_region
      _
    $region13: #{tpu_custom_call.1} parent=1 // pred_fallthru
      _
    // Predicated region
    $region14: #{tpu_custom_call.1} parent=1 // pred_check
      _
    $region15: #{tpu_custom_call.1} parent=1 // pred_check_branch
      %17 = sbr.rel (0) target = $region17
    $region16: #{tpu_custom_call.1} parent=1 // pred_region
      _
    $region17: #{tpu_custom_call.1} parent=1 // pred_fallthru
      _
    %v18 = vld [vmem:[%s0] sm:$0x1f]
    %v19 = vld [vmem:[%s1] sm:$0xff]
    %v20 = vld [vmem:[%s1 + $0x8] sm:$0xff]
    %v21 = vld [vmem:[%s1 + $0x10] sm:$0xff]
    %v22 = vld [vmem:[%s1 + $0x18] sm:$0xff]
    %v23 = vld [vmem:[%s1 + $0x20] sm:$0xff]
    %v24 = vld [vmem:[%s1 + $0x28] sm:$0xff]
    %v25 = vld [vmem:[%s1 + $0x30] sm:$0xff]
    %v26 = vld [vmem:[%s1 + $0x38] sm:$0xff]
    %v27 = vld [vmem:[%s1 + $0x40] sm:$0xff]
    %v28 = vld [vmem:[%s1 + $0x48] sm:$0xff]
    %v29 = vld [vmem:[%s1 + $0x50] sm:$0xff]
    %v30 = vld [vmem:[%s1 + $0x58] sm:$0xff]
    %v31 = vld [vmem:[%s1 + $0x60] sm:$0xff]
    %v32 = vld [vmem:[%s1 + $0x68] sm:$0xff]
    %v33 = vld [vmem:[%s1 + $0x70] sm:$0xff]
    %v34 = vld [vmem:[%s1 + $0x78] sm:$0xff]
    %v35 = vld [vmem:[%s2] sm:$0x1]
    %v36 = vld [vmem:[%s3] sm:$0x1]
    %v37 = vlaneseq
    %v38 = vshrl.u32 %v37, 7
    %v39 = vadd.s32 %v38, 8
    %v40 = vadd.s32 %v38, 16
    %v41 = vadd.s32 %v38, 24
    %v42 = vadd.s32 %v38, 32
    %v43 = vadd.s32 %v38, 40
    %v44 = vadd.s32 %v38, 48
    %v45 = vadd.s32 %v38, 56
    %v46 = vadd.s32 %v38, 64
    %v47 = vadd.s32 %v38, 72
    %v48 = vadd.s32 %v38, 80
    %v49 = vadd.s32 %v38, 88
    %v50 = vadd.s32 %v38, 96
    %v51 = vadd.s32 %v38, 104
    %v52 = vadd.s32 %v38, 112
    %v53 = vadd.s32 %v38, 120
    %v54 = vperm.slane %v35, 0
    %vm55 = vcmp.ge.s32.totalorder %v38, %v54
    %vm56 = vcmp.ge.s32.totalorder %v39, %v54
    %vm57 = vcmp.ge.s32.totalorder %v40, %v54
    %vm58 = vcmp.ge.s32.totalorder %v41, %v54
    %vm59 = vcmp.ge.s32.totalorder %v42, %v54
    %vm60 = vcmp.ge.s32.totalorder %v43, %v54
    %vm61 = vcmp.ge.s32.totalorder %v44, %v54
    %vm62 = vcmp.ge.s32.totalorder %v45, %v54
    %vm63 = vcmp.ge.s32.totalorder %v46, %v54
    %vm64 = vcmp.ge.s32.totalorder %v47, %v54
    %vm65 = vcmp.ge.s32.totalorder %v48, %v54
    %vm66 = vcmp.ge.s32.totalorder %v49, %v54
    %vm67 = vcmp.ge.s32.totalorder %v50, %v54
    %vm68 = vcmp.ge.s32.totalorder %v51, %v54
    %vm69 = vcmp.ge.s32.totalorder %v52, %v54
    %vm70 = vcmp.ge.s32.totalorder %v53, %v54
    %v71 = vperm.slane %v36, 0
    %vm72 = vcmp.lt.s32.totalorder %v38, %v71
    %vm73 = vcmp.lt.s32.totalorder %v39, %v71
    %vm74 = vcmp.lt.s32.totalorder %v40, %v71
    %vm75 = vcmp.lt.s32.totalorder %v41, %v71
    %vm76 = vcmp.lt.s32.totalorder %v42, %v71
    %vm77 = vcmp.lt.s32.totalorder %v43, %v71
    %vm78 = vcmp.lt.s32.totalorder %v44, %v71
    %vm79 = vcmp.lt.s32.totalorder %v45, %v71
    %vm80 = vcmp.lt.s32.totalorder %v46, %v71
    %vm81 = vcmp.lt.s32.totalorder %v47, %v71
    %vm82 = vcmp.lt.s32.totalorder %v48, %v71
    %vm83 = vcmp.lt.s32.totalorder %v49, %v71
    %vm84 = vcmp.lt.s32.totalorder %v50, %v71
    %vm85 = vcmp.lt.s32.totalorder %v51, %v71
    %vm86 = vcmp.lt.s32.totalorder %v52, %v71
    %vm87 = vcmp.lt.s32.totalorder %v53, %v71
    %vm88 = vmand %vm55, %vm72
    %vm89 = vmand %vm56, %vm73
    %vm90 = vmand %vm57, %vm74
    %vm91 = vmand %vm58, %vm75
    %vm92 = vmand %vm59, %vm76
    %vm93 = vmand %vm60, %vm77
    %vm94 = vmand %vm61, %vm78
    %vm95 = vmand %vm62, %vm79
    %vm96 = vmand %vm63, %vm80
    %vm97 = vmand %vm64, %vm81
    %vm98 = vmand %vm65, %vm82
    %vm99 = vmand %vm66, %vm83
    %vm100 = vmand %vm67, %vm84
    %vm101 = vmand %vm68, %vm85
    %vm102 = vmand %vm69, %vm86
    %vm103 = vmand %vm70, %vm87
    %105 = vset.pattern.permute.xlu0 0
    %106 = vperm.xlu0 %105, %v19
    %v107 = vpop.permute.xlu0 %106
    %110 = vset.pattern.permute.xlu0 0
    %111 = vperm.xlu0 %110, %v20
    %v112 = vpop.permute.xlu0 %111
    %115 = vset.pattern.permute.xlu0 0
    %116 = vperm.xlu0 %115, %v21
    %v117 = vpop.permute.xlu0 %116
    %120 = vset.pattern.permute.xlu0 0
    %121 = vperm.xlu0 %120, %v22
    %v122 = vpop.permute.xlu0 %121
    %125 = vset.pattern.permute.xlu0 0
    %126 = vperm.xlu0 %125, %v23
    %v127 = vpop.permute.xlu0 %126
    %130 = vset.pattern.permute.xlu0 0
    %131 = vperm.xlu0 %130, %v24
    %v132 = vpop.permute.xlu0 %131
    %135 = vset.pattern.permute.xlu0 0
    %136 = vperm.xlu0 %135, %v25
    %v137 = vpop.permute.xlu0 %136
    %140 = vset.pattern.permute.xlu0 0
    %141 = vperm.xlu0 %140, %v26
    %v142 = vpop.permute.xlu0 %141
    %145 = vset.pattern.permute.xlu0 0
    %146 = vperm.xlu0 %145, %v27
    %v147 = vpop.permute.xlu0 %146
    %150 = vset.pattern.permute.xlu0 0
    %151 = vperm.xlu0 %150, %v28
    %v152 = vpop.permute.xlu0 %151
    %155 = vset.pattern.permute.xlu0 0
    %156 = vperm.xlu0 %155, %v29
    %v157 = vpop.permute.xlu0 %156
    %160 = vset.pattern.permute.xlu0 0
    %161 = vperm.xlu0 %160, %v30
    %v162 = vpop.permute.xlu0 %161
    %165 = vset.pattern.permute.xlu0 0
    %166 = vperm.xlu0 %165, %v31
    %v167 = vpop.permute.xlu0 %166
    %170 = vset.pattern.permute.xlu0 0
    %171 = vperm.xlu0 %170, %v32
    %v172 = vpop.permute.xlu0 %171
    %175 = vset.pattern.permute.xlu0 0
    %176 = vperm.xlu0 %175, %v33
    %v177 = vpop.permute.xlu0 %176
    %180 = vset.pattern.permute.xlu0 0
    %181 = vperm.xlu0 %180, %v34
    %v182 = vpop.permute.xlu0 %181
    %v184 = vsel %vm88, %v107, -inf
    %v185 = vsel %vm89, %v112, -inf
    %v186 = vsel %vm90, %v117, -inf
    %v187 = vsel %vm91, %v122, -inf
    %v188 = vsel %vm92, %v127, -inf
    %v189 = vsel %vm93, %v132, -inf
    %v190 = vsel %vm94, %v137, -inf
    %v191 = vsel %vm95, %v142, -inf
    %v192 = vsel %vm96, %v147, -inf
    %v193 = vsel %vm97, %v152, -inf
    %v194 = vsel %vm98, %v157, -inf
    %v195 = vsel %vm99, %v162, -inf
    %v196 = vsel %vm100, %v167, -inf
    %v197 = vsel %vm101, %v172, -inf
    %v198 = vsel %vm102, %v177, -inf
    %v199 = vsel %vm103, %v182, -inf
    %v200 = vmax.f32 %v184, %v188
    %v201 = vmax.f32 %v185, %v189
    %v202 = vmax.f32 %v186, %v190
    %v203 = vmax.f32 %v187, %v191
    %v204 = vmax.f32 %v200, %v192
    %v205 = vmax.f32 %v201, %v193
    %v206 = vmax.f32 %v202, %v194
    %v207 = vmax.f32 %v203, %v195
    %v208 = vmax.f32 %v204, %v196
    %v209 = vmax.f32 %v205, %v197
    %v210 = vmax.f32 %v206, %v198
    %v211 = vmax.f32 %v207, %v199
    %v212 = vmax.f32 %v208, %v209
    %v213 = vmax.f32 %v210, %v211
    %v214 = vmax.f32 %v212, %v213
    %v215 = vrot.slane %v214, 4
    %v216 = vmax.f32 %v214, %v215
    %v217 = vrot.slane %v216, 2
    %v218 = vmax.f32 %v216, %v217
    %v219 = vrot.slane %v218, 1
    %v220 = vmax.f32 %v218, %v219
    %vm221 = vcmp.eq.f32.partialorder %v220, -inf
    %v222 = vsel %vm221, 0.0, %v220
    %v223 = vsub.f32 %v184, %v222
    %v224 = vsub.f32 %v185, %v222
    %v225 = vsub.f32 %v186, %v222
    %v226 = vsub.f32 %v187, %v222
    %v227 = vsub.f32 %v188, %v222
    %v228 = vsub.f32 %v189, %v222
    %v229 = vsub.f32 %v190, %v222
    %v230 = vsub.f32 %v191, %v222
    %v231 = vsub.f32 %v192, %v222
    %v232 = vsub.f32 %v193, %v222
    %v233 = vsub.f32 %v194, %v222
    %v234 = vsub.f32 %v195, %v222
    %v235 = vsub.f32 %v196, %v222
    %v236 = vsub.f32 %v197, %v222
    %v237 = vsub.f32 %v198, %v222
    %v238 = vsub.f32 %v199, %v222
    %v239 = vmul.f32 %v223, 1.442695
    %v240 = vpow.pop %v239
    %v241 = vmul.f32 %v224, 1.442695
    %v242 = vpow.pop %v241
    %v243 = vmul.f32 %v225, 1.442695
    %v244 = vpow.pop %v243
    %v245 = vmul.f32 %v226, 1.442695
    %v246 = vpow.pop %v245
    %v247 = vmul.f32 %v227, 1.442695
    %v248 = vpow.pop %v247
    %v249 = vmul.f32 %v228, 1.442695
    %v250 = vpow.pop %v249
    %v251 = vmul.f32 %v229, 1.442695
    %v252 = vpow.pop %v251
    %v253 = vmul.f32 %v230, 1.442695
    %v254 = vpow.pop %v253
    %v255 = vmul.f32 %v231, 1.442695
    %v256 = vpow.pop %v255
    %v257 = vmul.f32 %v232, 1.442695
    %v258 = vpow.pop %v257
    %v259 = vmul.f32 %v233, 1.442695
    %v260 = vpow.pop %v259
    %v261 = vmul.f32 %v234, 1.442695
    %v262 = vpow.pop %v261
    %v263 = vmul.f32 %v235, 1.442695
    %v264 = vpow.pop %v263
    %v265 = vmul.f32 %v236, 1.442695
    %v266 = vpow.pop %v265
    %v267 = vmul.f32 %v237, 1.442695
    %v268 = vpow.pop %v267
    %v269 = vmul.f32 %v238, 1.442695
    %v270 = vpow.pop %v269
    %271 = vmatpush.msra.mxu0 %v270
    %272 = vmatpush.msra.mxu0 %v268
    %273 = vmatpush.msra.mxu0 %v266
    %274 = vmatpush.msra.mxu0 %v264
    %275 = vmatpush.msra.mxu0 %v262
    %276 = vmatpush.msra.mxu0 %v260
    %277 = vmatpush.msra.mxu0 %v258
    %278 = vmatpush.msra.mxu0 %v256
    %279 = vmatpush.msra.mxu0 %v254
    %280 = vmatpush.msra.mxu0 %v252
    %281 = vmatpush.msra.mxu0 %v250
    %282 = vmatpush.msra.mxu0 %v248
    %283 = vmatpush.msra.mxu0 %v246
    %284 = vmatpush.msra.mxu0 %v244
    %285 = vmatpush.msra.mxu0 %v242
    %286 = vmatpush.msra.mxu0 %v240
    %287 = vmatmul.f32.gmra.mxu0 %v18
    %v288 = vpop.f32.mrf.mxu0
    %v289 = vadd.f32 0.0, %v288
    %290 = vdwg.mxu0
    %vm291 = vcmp.eq.f32.partialorder %v289, 0.0
    %v292 = vsel %vm291, 1.0, %v289
    %v293 = vrcp.pop %v292
    %v294 = vmul.f32 %v292, %v293
    %v295 = vsub.f32 2.0, %v294
    %v296 = vmul.f32 %v293, %v295
    %v297 = vperm.slane %v296, 4
    %v298 = vmul.f32 %v289, %v297
    %299 = vst [vmem:[#allocation2] sm:$0xf] %v298
    // Predicated region
    $region18: #{tpu_custom_call.1} parent=1 // pred_check
      _
    $region19: #{tpu_custom_call.1} parent=1 // pred_check_branch
      %301 = sbr.rel (0) target = $region21
    $region20: #{tpu_custom_call.1} parent=1 // pred_region
      %303 = vsyncadd [#allocation3], 0
      %s305 = sshll.u32 [#allocation2], 4
      %s306 = int_to_ptr.vmem [resolvable:$true] %s305
      %s307 = sshll.u32 %s4, 4
      %s308 = int_to_ptr.hbm [resolvable:$true] %s307
      %310 = dma.vmem_to_hbm [thread:$0]  %s306, 64, %s308, [#allocation3]
    $region21: #{tpu_custom_call.1} parent=1 // pred_fallthru
      _
    // Predicated region
    $region22: #{tpu_custom_call.1} parent=1 // pred_check
      _
    $region23: #{tpu_custom_call.1} parent=1 // pred_check_branch
      %312 = sbr.rel (0) target = $region25
    $region24: #{tpu_custom_call.1} parent=1 // pred_region
      %314 = dma.done [#allocation3], 64
    $region25: #{tpu_custom_call.1} parent=1 // pred_fallthru
      _
    %315 = vsyncpa [#allocation3], 1

</llo_original>
